<compile_context>
chip_gen: v7x
topology: tpu7x:2x2x1
jax: 0.10.0
libtpu: 0.0.40
codegen_flags: <defaults>
</compile_context>

<pallas_src>
import jax
import jax.numpy as jnp
from jax.experimental import pallas as pl
from jax.experimental.pallas import tpu as pltpu


def _meta_controller_kernel(x_ref, w_ref, o_ref):
    """Fused (BN-folded) Linear -> ReLU -> Linear -> Tanh, all on the VPU.

    x_ref : (B, D_in)                 input resource metrics
    w_ref : (D_in + 1 + H + 1, L)     single packed weight slab, L = max(H, D_out)
              rows [0:D_in]           folded W1   (lane-padded to L)
              row  D_in               folded b1
              rows [D_in+1:D_in+1+H]  W2          (lane-padded to L)
              row  D_in+1+H           b2
    o_ref : (B, D_out)                output adjustment signals in (-1, 1)
    """
    x = x_ref[...]                            # (B, D_in)
    d_in = x.shape[1]
    d_out = o_ref.shape[1]
    h_dim = w_ref.shape[0] - d_in - 2         # H

    w = w_ref[...]                            # single VMEM load of the whole slab

    # --- Layer 1: x @ W1' + b1' as unrolled VPU broadcast-FMAs (K = D_in) ---
    h = w[d_in:d_in + 1, :]                   # (1, L) bias row, broadcasts over B
    for k in range(d_in):                     # static unroll
        h = h + x[:, k:k + 1] * w[k:k + 1, :]
    h = jnp.maximum(h, 0.0)                   # ReLU
    # TODO(synk): training-mode dropout (pltpu.prng_random_bits mask) not emitted;
    # Dropout is identity in the deterministic/eval forward.

    # --- Layer 2: h @ W2 + b2, also as unrolled VPU FMAs (K = H), then Tanh ---
    base = d_in + 1
    y = w[base + h_dim:base + h_dim + 1, :]   # (1, L) padded b2 row
    for k in range(h_dim):                    # static unroll over H
        y = y + h[:, k:k + 1] * w[base + k:base + k + 1, :]
    o_ref[...] = jnp.tanh(y[:, :d_out]).astype(o_ref.dtype)


def _pack_slab(w1, b1, w2, b2):
    """Packs (W1|b1|W2|b2) into one lane-padded f32 slab of shape (D_in+H+2, L)."""
    d_in, h = w1.shape
    d_out = w2.shape[1]
    lane = max(h, d_out)

    def pad_lane(a):
        return jnp.pad(a, ((0, 0), (0, lane - a.shape[1])))

    return jnp.concatenate(
        [pad_lane(w1), pad_lane(b1[None, :]), pad_lane(w2), pad_lane(b2[None, :])],
        axis=0,
    ).astype(jnp.float32)


def prepare_meta_controller_params(params):
    """One-time param prep: fold eval-mode BatchNorm1d into the first Linear and
    pack everything into single weight slabs (BN-folded and raw variants).

    Linear weights are stored pre-transposed: (in_features, out_features).
    """
    w1 = params["w1"].astype(jnp.float32)          # (D_in, H)
    b1 = params["b1"].astype(jnp.float32)          # (H,)
    w2 = params["w2"].astype(jnp.float32)          # (H, D_out)
    b2 = params["b2"].astype(jnp.float32)          # (D_out,)

    # Fold eval-mode BN: x_bn = (x - mean) * gamma/sqrt(var+eps) + beta
    #   => x_bn @ W1 + b1 = x @ (diag(scale) @ W1) + (b1 + shift @ W1)
    eps = 1e-5
    scale = params["bn_gamma"].astype(jnp.float32) * jax.lax.rsqrt(
        params["bn_var"].astype(jnp.float32) + eps)                       # (D_in,)
    shift = (params["bn_beta"].astype(jnp.float32)
             - params["bn_mean"].astype(jnp.float32) * scale)             # (D_in,)
    w1_bn = w1 * scale[:, None]
    b1_bn = b1 + shift @ w1

    slab_bn = _pack_slab(w1_bn, b1_bn, w2, b2)     # used when BN is active
    slab_raw = _pack_slab(w1, b1, w2, b2)          # used when BN is bypassed
    return dict(
        slab_bn=jax.device_put(slab_bn),
        slab_raw=jax.device_put(slab_raw),
        input_dim=w1.shape[0],
        hidden_dim=w1.shape[1],
        output_dim=w2.shape[1],
    )


def meta_controller_forward(x, packed, use_normalization=True):
    """Runs the MetaController forward pass via a Pallas TPU kernel.

    Args:
      x: (batch, input_dim) float32 resource metrics (pre-scaled).
      packed: output of prepare_meta_controller_params(params).
      use_normalization: mirrors the module flag (static Python value).

    Returns:
      (batch, output_dim) float32 adjustment signals in (-1, 1).
    """
    B, D_in = x.shape
    assert D_in == packed["input_dim"]
    H = packed["hidden_dim"]
    D_out = packed["output_dim"]

    # `self.use_normalization and resource_metrics.size(0) > 1` is static here,
    # so pick the precomputed slab at trace time (no runtime flag, no select).
    bn_active = use_normalization and B > 1
    slab = packed["slab_bn"] if bn_active else packed["slab_raw"]
    slab_rows, lane = slab.shape

    x32 = x if x.dtype == jnp.float32 else x.astype(jnp.float32)

    vmem = pltpu.MemorySpace.VMEM
    out = pl.pallas_call(
        _meta_controller_kernel,
        out_shape=jax.ShapeDtypeStruct((B, D_out), jnp.float32),
        grid=(),
        in_specs=[
            pl.BlockSpec((B, D_in), lambda: (0, 0), memory_space=vmem),
            pl.BlockSpec((slab_rows, lane), lambda: (0, 0), memory_space=vmem),
        ],
        out_specs=pl.BlockSpec((B, D_out), lambda: (0, 0), memory_space=vmem),
        cost_estimate=pl.CostEstimate(
            flops=2 * B * (D_in * H + H * D_out),
            transcendentals=B * D_out,
            bytes_accessed=4 * (B * D_in + slab_rows * lane + B * D_out),
        ),
    )(x32, slab)
    return out


def init_params(key, input_dim=2, hidden_dim=16, output_dim=3):
    """Deterministic synthetic parameters matching MetaController.__init__ shapes."""
    ks = jax.random.split(key, 8)
    # Linear weights stored pre-transposed: (in_features, out_features).
    w1 = jax.random.normal(ks[0], (input_dim, hidden_dim), jnp.float32) * 0.5
    b1 = jax.random.normal(ks[1], (hidden_dim,), jnp.float32) * 0.1
    w2 = jax.random.normal(ks[2], (hidden_dim, output_dim), jnp.float32) * 0.5
    b2 = jax.random.normal(ks[3], (output_dim,), jnp.float32) * 0.1
    # BatchNorm1d(input_dim): weight, bias, running_mean, running_var.
    bn_gamma = 1.0 + 0.1 * jax.random.normal(ks[4], (input_dim,), jnp.float32)
    bn_beta = 0.1 * jax.random.normal(ks[5], (input_dim,), jnp.float32)
    bn_mean = 0.1 * jax.random.normal(ks[6], (input_dim,), jnp.float32)
    bn_var = jnp.abs(1.0 + 0.1 * jax.random.normal(ks[7], (input_dim,), jnp.float32))
    return dict(
        bn_gamma=bn_gamma, bn_beta=bn_beta, bn_mean=bn_mean, bn_var=bn_var,
        w1=w1, b1=b1, w2=w2, b2=b2,
    )


def _reference_forward(x, p, use_normalization=True):
    """Pure-JAX reference matching the PyTorch eval-mode forward."""
    if use_normalization and x.shape[0] > 1:
        x = (x - p["bn_mean"]) / jnp.sqrt(p["bn_var"] + 1e-5) * p["bn_gamma"] + p["bn_beta"]
    h = jnp.maximum(x @ p["w1"] + p["b1"], 0.0)
    return jnp.tanh(h @ p["w2"] + p["b2"])


if __name__ == "__main__":
    key = jax.random.PRNGKey(0)
    k_params, k_x = jax.random.split(key)

    batch, input_dim, hidden_dim, output_dim = 8, 2, 16, 3
    params = init_params(k_params, input_dim, hidden_dim, output_dim)
    # One-time prep: BN fold + slab packing happen here, not per forward call.
    packed = prepare_meta_controller_params(params)

    # Pre-scaled resource metrics, e.g. [cpu_frac, mem_frac] per sample.
    x = jax.random.uniform(k_x, (batch, input_dim), jnp.float32)

    # BN-active path (batch > 1, use_normalization=True).
    out = meta_controller_forward(x, packed, use_normalization=True)
    out = jax.block_until_ready(out)
    ref = _reference_forward(x, params, use_normalization=True)
    assert out.shape == (batch, output_dim)
    assert jnp.allclose(out, ref, atol=1e-4, rtol=1e-4), "mismatch vs reference (BN on)"

    # BN-skipped path (batch == 1 -> module bypasses BatchNorm).
    x1 = x[:1]
    out1 = meta_controller_forward(x1, packed, use_normalization=True)
    out1 = jax.block_until_ready(out1)
    ref1 = _reference_forward(x1, params, use_normalization=True)
    assert out1.shape == (1, output_dim)
    assert jnp.allclose(out1, ref1, atol=1e-4, rtol=1e-4), "mismatch vs reference (BN skipped)"

    # use_normalization=False path.
    out_nn = meta_controller_forward(x, packed, use_normalization=False)
    out_nn = jax.block_until_ready(out_nn)
    ref_nn = _reference_forward(x, params, use_normalization=False)
    assert jnp.allclose(out_nn, ref_nn, atol=1e-4, rtol=1e-4), "mismatch vs reference (BN off)"

    print("KERNEL_OK")
</pallas_src>

<mosaic_0001>
module attributes {stable_mosaic.version = 11 : i64} {
  func.func @_meta_controller_kernel(%arg0: memref<8x2xf32, #tpu.memory_space<vmem>>, %arg1: memref<20x16xf32, #tpu.memory_space<vmem>>, %arg2: memref<8x3xf32, #tpu.memory_space<vmem>>) attributes {dimension_semantics = [], scalar_prefetch = 0 : i64, scratch_operands = 0 : i64, tpu.core_type = #tpu.core_type<tc>} {
    %c0 = arith.constant 0 : index
    %c0_0 = arith.constant 0 : index
    %0 = vector.load %arg0[%c0, %c0_0] : memref<8x2xf32, #tpu.memory_space<vmem>>, vector<8x2xf32>
    %c0_1 = arith.constant 0 : index
    %c0_2 = arith.constant 0 : index
    %1 = vector.load %arg1[%c0_1, %c0_2] : memref<20x16xf32, #tpu.memory_space<vmem>>, vector<20x16xf32>
    %2 = vector.extract_strided_slice %1 {offsets = [2, 0], sizes = [1, 16], strides = [1, 1]} : vector<20x16xf32> to vector<1x16xf32>
    %3 = vector.extract_strided_slice %0 {offsets = [0, 0], sizes = [8, 1], strides = [1, 1]} : vector<8x2xf32> to vector<8x1xf32>
    %4 = vector.extract_strided_slice %1 {offsets = [0, 0], sizes = [1, 16], strides = [1, 1]} : vector<20x16xf32> to vector<1x16xf32>
    %5 = vector.broadcast %3 : vector<8x1xf32> to vector<8x16xf32>
    %6 = vector.broadcast %4 : vector<1x16xf32> to vector<8x16xf32>
    %7 = arith.mulf %5, %6 : vector<8x16xf32>
    %8 = vector.broadcast %2 : vector<1x16xf32> to vector<8x16xf32>
    %9 = arith.addf %8, %7 : vector<8x16xf32>
    %10 = vector.extract_strided_slice %0 {offsets = [0, 1], sizes = [8, 1], strides = [1, 1]} : vector<8x2xf32> to vector<8x1xf32>
    %11 = vector.extract_strided_slice %1 {offsets = [1, 0], sizes = [1, 16], strides = [1, 1]} : vector<20x16xf32> to vector<1x16xf32>
    %12 = vector.broadcast %10 : vector<8x1xf32> to vector<8x16xf32>
    %13 = vector.broadcast %11 : vector<1x16xf32> to vector<8x16xf32>
    %14 = arith.mulf %12, %13 : vector<8x16xf32>
    %15 = arith.addf %9, %14 : vector<8x16xf32>
    %cst = arith.constant 0.000000e+00 : f32
    %16 = vector.broadcast %cst : f32 to vector<8x16xf32>
    %17 = arith.maximumf %15, %16 : vector<8x16xf32>
    %18 = vector.extract_strided_slice %1 {offsets = [19, 0], sizes = [1, 16], strides = [1, 1]} : vector<20x16xf32> to vector<1x16xf32>
    %19 = vector.extract_strided_slice %17 {offsets = [0, 0], sizes = [8, 1], strides = [1, 1]} : vector<8x16xf32> to vector<8x1xf32>
    %20 = vector.extract_strided_slice %1 {offsets = [3, 0], sizes = [1, 16], strides = [1, 1]} : vector<20x16xf32> to vector<1x16xf32>
    %21 = vector.broadcast %19 : vector<8x1xf32> to vector<8x16xf32>
    %22 = vector.broadcast %20 : vector<1x16xf32> to vector<8x16xf32>
    %23 = arith.mulf %21, %22 : vector<8x16xf32>
    %24 = vector.broadcast %18 : vector<1x16xf32> to vector<8x16xf32>
    %25 = arith.addf %24, %23 : vector<8x16xf32>
    %26 = vector.extract_strided_slice %17 {offsets = [0, 1], sizes = [8, 1], strides = [1, 1]} : vector<8x16xf32> to vector<8x1xf32>
    %27 = vector.extract_strided_slice %1 {offsets = [4, 0], sizes = [1, 16], strides = [1, 1]} : vector<20x16xf32> to vector<1x16xf32>
    %28 = vector.broadcast %26 : vector<8x1xf32> to vector<8x16xf32>
    %29 = vector.broadcast %27 : vector<1x16xf32> to vector<8x16xf32>
    %30 = arith.mulf %28, %29 : vector<8x16xf32>
    %31 = arith.addf %25, %30 : vector<8x16xf32>
    %32 = vector.extract_strided_slice %17 {offsets = [0, 2], sizes = [8, 1], strides = [1, 1]} : vector<8x16xf32> to vector<8x1xf32>
    %33 = vector.extract_strided_slice %1 {offsets = [5, 0], sizes = [1, 16], strides = [1, 1]} : vector<20x16xf32> to vector<1x16xf32>
    %34 = vector.broadcast %32 : vector<8x1xf32> to vector<8x16xf32>
    %35 = vector.broadcast %33 : vector<1x16xf32> to vector<8x16xf32>
    %36 = arith.mulf %34, %35 : vector<8x16xf32>
    %37 = arith.addf %31, %36 : vector<8x16xf32>
    %38 = vector.extract_strided_slice %17 {offsets = [0, 3], sizes = [8, 1], strides = [1, 1]} : vector<8x16xf32> to vector<8x1xf32>
    %39 = vector.extract_strided_slice %1 {offsets = [6, 0], sizes = [1, 16], strides = [1, 1]} : vector<20x16xf32> to vector<1x16xf32>
    %40 = vector.broadcast %38 : vector<8x1xf32> to vector<8x16xf32>
    %41 = vector.broadcast %39 : vector<1x16xf32> to vector<8x16xf32>
    %42 = arith.mulf %40, %41 : vector<8x16xf32>
    %43 = arith.addf %37, %42 : vector<8x16xf32>
    %44 = vector.extract_strided_slice %17 {offsets = [0, 4], sizes = [8, 1], strides = [1, 1]} : vector<8x16xf32> to vector<8x1xf32>
    %45 = vector.extract_strided_slice %1 {offsets = [7, 0], sizes = [1, 16], strides = [1, 1]} : vector<20x16xf32> to vector<1x16xf32>
    %46 = vector.broadcast %44 : vector<8x1xf32> to vector<8x16xf32>
    %47 = vector.broadcast %45 : vector<1x16xf32> to vector<8x16xf32>
    %48 = arith.mulf %46, %47 : vector<8x16xf32>
    %49 = arith.addf %43, %48 : vector<8x16xf32>
    %50 = vector.extract_strided_slice %17 {offsets = [0, 5], sizes = [8, 1], strides = [1, 1]} : vector<8x16xf32> to vector<8x1xf32>
    %51 = vector.extract_strided_slice %1 {offsets = [8, 0], sizes = [1, 16], strides = [1, 1]} : vector<20x16xf32> to vector<1x16xf32>
    %52 = vector.broadcast %50 : vector<8x1xf32> to vector<8x16xf32>
    %53 = vector.broadcast %51 : vector<1x16xf32> to vector<8x16xf32>
    %54 = arith.mulf %52, %53 : vector<8x16xf32>
    %55 = arith.addf %49, %54 : vector<8x16xf32>
    %56 = vector.extract_strided_slice %17 {offsets = [0, 6], sizes = [8, 1], strides = [1, 1]} : vector<8x16xf32> to vector<8x1xf32>
    %57 = vector.extract_strided_slice %1 {offsets = [9, 0], sizes = [1, 16], strides = [1, 1]} : vector<20x16xf32> to vector<1x16xf32>
    %58 = vector.broadcast %56 : vector<8x1xf32> to vector<8x16xf32>
    %59 = vector.broadcast %57 : vector<1x16xf32> to vector<8x16xf32>
    %60 = arith.mulf %58, %59 : vector<8x16xf32>
    %61 = arith.addf %55, %60 : vector<8x16xf32>
    %62 = vector.extract_strided_slice %17 {offsets = [0, 7], sizes = [8, 1], strides = [1, 1]} : vector<8x16xf32> to vector<8x1xf32>
    %63 = vector.extract_strided_slice %1 {offsets = [10, 0], sizes = [1, 16], strides = [1, 1]} : vector<20x16xf32> to vector<1x16xf32>
    %64 = vector.broadcast %62 : vector<8x1xf32> to vector<8x16xf32>
    %65 = vector.broadcast %63 : vector<1x16xf32> to vector<8x16xf32>
    %66 = arith.mulf %64, %65 : vector<8x16xf32>
    %67 = arith.addf %61, %66 : vector<8x16xf32>
    %68 = vector.extract_strided_slice %17 {offsets = [0, 8], sizes = [8, 1], strides = [1, 1]} : vector<8x16xf32> to vector<8x1xf32>
    %69 = vector.extract_strided_slice %1 {offsets = [11, 0], sizes = [1, 16], strides = [1, 1]} : vector<20x16xf32> to vector<1x16xf32>
    %70 = vector.broadcast %68 : vector<8x1xf32> to vector<8x16xf32>
    %71 = vector.broadcast %69 : vector<1x16xf32> to vector<8x16xf32>
    %72 = arith.mulf %70, %71 : vector<8x16xf32>
    %73 = arith.addf %67, %72 : vector<8x16xf32>
    %74 = vector.extract_strided_slice %17 {offsets = [0, 9], sizes = [8, 1], strides = [1, 1]} : vector<8x16xf32> to vector<8x1xf32>
    %75 = vector.extract_strided_slice %1 {offsets = [12, 0], sizes = [1, 16], strides = [1, 1]} : vector<20x16xf32> to vector<1x16xf32>
    %76 = vector.broadcast %74 : vector<8x1xf32> to vector<8x16xf32>
    %77 = vector.broadcast %75 : vector<1x16xf32> to vector<8x16xf32>
    %78 = arith.mulf %76, %77 : vector<8x16xf32>
    %79 = arith.addf %73, %78 : vector<8x16xf32>
    %80 = vector.extract_strided_slice %17 {offsets = [0, 10], sizes = [8, 1], strides = [1, 1]} : vector<8x16xf32> to vector<8x1xf32>
    %81 = vector.extract_strided_slice %1 {offsets = [13, 0], sizes = [1, 16], strides = [1, 1]} : vector<20x16xf32> to vector<1x16xf32>
    %82 = vector.broadcast %80 : vector<8x1xf32> to vector<8x16xf32>
    %83 = vector.broadcast %81 : vector<1x16xf32> to vector<8x16xf32>
    %84 = arith.mulf %82, %83 : vector<8x16xf32>
    %85 = arith.addf %79, %84 : vector<8x16xf32>
    %86 = vector.extract_strided_slice %17 {offsets = [0, 11], sizes = [8, 1], strides = [1, 1]} : vector<8x16xf32> to vector<8x1xf32>
    %87 = vector.extract_strided_slice %1 {offsets = [14, 0], sizes = [1, 16], strides = [1, 1]} : vector<20x16xf32> to vector<1x16xf32>
    %88 = vector.broadcast %86 : vector<8x1xf32> to vector<8x16xf32>
    %89 = vector.broadcast %87 : vector<1x16xf32> to vector<8x16xf32>
    %90 = arith.mulf %88, %89 : vector<8x16xf32>
    %91 = arith.addf %85, %90 : vector<8x16xf32>
    %92 = vector.extract_strided_slice %17 {offsets = [0, 12], sizes = [8, 1], strides = [1, 1]} : vector<8x16xf32> to vector<8x1xf32>
    %93 = vector.extract_strided_slice %1 {offsets = [15, 0], sizes = [1, 16], strides = [1, 1]} : vector<20x16xf32> to vector<1x16xf32>
    %94 = vector.broadcast %92 : vector<8x1xf32> to vector<8x16xf32>
    %95 = vector.broadcast %93 : vector<1x16xf32> to vector<8x16xf32>
    %96 = arith.mulf %94, %95 : vector<8x16xf32>
    %97 = arith.addf %91, %96 : vector<8x16xf32>
    %98 = vector.extract_strided_slice %17 {offsets = [0, 13], sizes = [8, 1], strides = [1, 1]} : vector<8x16xf32> to vector<8x1xf32>
    %99 = vector.extract_strided_slice %1 {offsets = [16, 0], sizes = [1, 16], strides = [1, 1]} : vector<20x16xf32> to vector<1x16xf32>
    %100 = vector.broadcast %98 : vector<8x1xf32> to vector<8x16xf32>
    %101 = vector.broadcast %99 : vector<1x16xf32> to vector<8x16xf32>
    %102 = arith.mulf %100, %101 : vector<8x16xf32>
    %103 = arith.addf %97, %102 : vector<8x16xf32>
    %104 = vector.extract_strided_slice %17 {offsets = [0, 14], sizes = [8, 1], strides = [1, 1]} : vector<8x16xf32> to vector<8x1xf32>
    %105 = vector.extract_strided_slice %1 {offsets = [17, 0], sizes = [1, 16], strides = [1, 1]} : vector<20x16xf32> to vector<1x16xf32>
    %106 = vector.broadcast %104 : vector<8x1xf32> to vector<8x16xf32>
    %107 = vector.broadcast %105 : vector<1x16xf32> to vector<8x16xf32>
    %108 = arith.mulf %106, %107 : vector<8x16xf32>
    %109 = arith.addf %103, %108 : vector<8x16xf32>
    %110 = vector.extract_strided_slice %17 {offsets = [0, 15], sizes = [8, 1], strides = [1, 1]} : vector<8x16xf32> to vector<8x1xf32>
    %111 = vector.extract_strided_slice %1 {offsets = [18, 0], sizes = [1, 16], strides = [1, 1]} : vector<20x16xf32> to vector<1x16xf32>
    %112 = vector.broadcast %110 : vector<8x1xf32> to vector<8x16xf32>
    %113 = vector.broadcast %111 : vector<1x16xf32> to vector<8x16xf32>
    %114 = arith.mulf %112, %113 : vector<8x16xf32>
    %115 = arith.addf %109, %114 : vector<8x16xf32>
    %116 = vector.extract_strided_slice %115 {offsets = [0, 0], sizes = [8, 3], strides = [1, 1]} : vector<8x16xf32> to vector<8x3xf32>
    %117 = math.tanh %116 : vector<8x3xf32>
    %c0_3 = arith.constant 0 : index
    %c0_4 = arith.constant 0 : index
    %118 = vector.load %arg2[%c0_3, %c0_4] : memref<8x3xf32, #tpu.memory_space<vmem>>, vector<8x3xf32>
    tpu.vector_store %arg2[%c0_3, %c0_4], %117 {strides = array<i32>} : memref<8x3xf32, #tpu.memory_space<vmem>>, vector<8x3xf32>,
    return
  }
}

</mosaic_0001>

<llo_original>
// kernel: tpu_custom_call.1
$region0: #{tpu_custom_call.1}
  #allocation0 [shape = 'u32[]', space=smem, size = 0x4, offset = 0x4, fixed_abs, tag = 'smem constant byte address 0x4 - core index']
  #allocation1 [shape = 'u32[144,128]{1,0:T(1,128)}', space=vmem, size = 0x12000, scoped, tag = 'internal scratch']
  %s0 = inlined_call_operand.vmem [shape: f32[8,2], index: 0, kind: input, shape index: {}]
  %s1 = inlined_call_operand.vmem [shape: f32[20,16], index: 1, kind: input, shape index: {}]
  %s2 = inlined_call_operand.vmem [shape: f32[8,3], index: 2, kind: output, shape index: {}]
  %s3 = sld [smem:[#allocation0]]
  $region18: #{tpu_custom_call.1} parent=0
    _
  %s5 = ssub.s32 1, %s3
  %s6 = scalar_select 0, %s5, %s3
  // Predicated region
  $region2: #{tpu_custom_call.1} parent=0 // pred_check
    _
  $region3: #{tpu_custom_call.1} parent=0 // pred_check_branch
    %8 = sbr.rel (0) target = $region5
  $region4: #{tpu_custom_call.1} parent=0 // pred_region
    _
  $region5: #{tpu_custom_call.1} parent=0 // pred_fallthru
    _
  // Predicated region
  $region6: #{tpu_custom_call.1} parent=0 // pred_check
    _
  $region7: #{tpu_custom_call.1} parent=0 // pred_check_branch
    %10 = sbr.rel (0) target = $region9
  $region8: #{tpu_custom_call.1} parent=0 // pred_region
    _
  $region9: #{tpu_custom_call.1} parent=0 // pred_fallthru
    _
  %v11 = vld [vmem:[%s0] sm:$0xff]
  %v12 = vld [vmem:[%s1] sm:$0xff]
  %v13 = vld [vmem:[%s1 + $0x8] sm:$0xff]
  %v14 = vld [vmem:[%s1 + $0x10] sm:$0xf]
  %16 = vset.pattern.permute.xlu0 0
  %17 = vperm.xlu0 %16, %v11
  %v18 = vpop.permute.xlu0 %17
  %v20 = vlaneseq
  %v21 = vshrl.u32 %v20, 7
  %v22 = vsub.s32 0, %v21
  %v23 = vrot.slane %v12, %v22
  %v24 = vmul.f32 %v18, %v23
  %v25 = vlaneseq
  %v26 = vshrl.u32 %v25, 7
  %v27 = vsub.s32 2, %v26
  %v28 = vrot.slane %v12, %v27
  %v29 = vadd.f32 %v28, %v24
  %30 = vset.pattern.permute.xlu0 1
  %31 = vperm.xlu0 %30, %v11
  %v32 = vpop.permute.xlu0 %31
  %v34 = vlaneseq
  %v35 = vshrl.u32 %v34, 7
  %v36 = vsub.s32 1, %v35
  %v37 = vrot.slane %v12, %v36
  %v38 = vmul.f32 %v32, %v37
  %v39 = vadd.f32 %v29, %v38
  %v40 = vmax.f32 %v39, 0.0
  %42 = vset.pattern.permute.xlu0 0
  %43 = vperm.xlu0 %42, %v40
  %v44 = vpop.permute.xlu0 %43
  %v46 = vlaneseq
  %v47 = vshrl.u32 %v46, 7
  %v48 = vsub.s32 3, %v47
  %v49 = vrot.slane %v12, %v48
  %v50 = vmul.f32 %v44, %v49
  %v51 = vlaneseq
  %v52 = vshrl.u32 %v51, 7
  %v53 = vsub.s32 3, %v52
  %v54 = vrot.slane %v14, %v53
  %v55 = vadd.f32 %v54, %v50
  %56 = vset.pattern.permute.xlu0 1
  %57 = vperm.xlu0 %56, %v40
  %v58 = vpop.permute.xlu0 %57
  %v60 = vlaneseq
  %v61 = vshrl.u32 %v60, 7
  %v62 = vsub.s32 4, %v61
  %v63 = vrot.slane %v12, %v62
  %v64 = vmul.f32 %v58, %v63
  %v65 = vadd.f32 %v55, %v64
  %66 = vset.pattern.permute.xlu0 2
  %67 = vperm.xlu0 %66, %v40
  %v68 = vpop.permute.xlu0 %67
  %v70 = vlaneseq
  %v71 = vshrl.u32 %v70, 7
  %v72 = vsub.s32 5, %v71
  %v73 = vrot.slane %v12, %v72
  %v74 = vmul.f32 %v68, %v73
  %v75 = vadd.f32 %v65, %v74
  %76 = vset.pattern.permute.xlu0 3
  %77 = vperm.xlu0 %76, %v40
  %v78 = vpop.permute.xlu0 %77
  %v80 = vlaneseq
  %v81 = vshrl.u32 %v80, 7
  %v82 = vsub.s32 6, %v81
  %v83 = vrot.slane %v12, %v82
  %v84 = vmul.f32 %v78, %v83
  %v85 = vadd.f32 %v75, %v84
  %86 = vset.pattern.permute.xlu0 4
  %87 = vperm.xlu0 %86, %v40
  %v88 = vpop.permute.xlu0 %87
  %v90 = vlaneseq
  %v91 = vshrl.u32 %v90, 7
  %v92 = vsub.s32 7, %v91
  %v93 = vrot.slane %v12, %v92
  %v94 = vmul.f32 %v88, %v93
  %v95 = vadd.f32 %v85, %v94
  %96 = vset.pattern.permute.xlu0 5
  %97 = vperm.xlu0 %96, %v40
  %v98 = vpop.permute.xlu0 %97
  %v100 = vlaneseq
  %v101 = vshrl.u32 %v100, 7
  %v102 = vsub.s32 0, %v101
  %v103 = vrot.slane %v13, %v102
  %v104 = vmul.f32 %v98, %v103
  %v105 = vadd.f32 %v95, %v104
  %106 = vset.pattern.permute.xlu0 6
  %107 = vperm.xlu0 %106, %v40
  %v108 = vpop.permute.xlu0 %107
  %v110 = vlaneseq
  %v111 = vshrl.u32 %v110, 7
  %v112 = vsub.s32 1, %v111
  %v113 = vrot.slane %v13, %v112
  %v114 = vmul.f32 %v108, %v113
  %v115 = vadd.f32 %v105, %v114
  %116 = vset.pattern.permute.xlu0 7
  %117 = vperm.xlu0 %116, %v40
  %v118 = vpop.permute.xlu0 %117
  %v120 = vlaneseq
  %v121 = vshrl.u32 %v120, 7
  %v122 = vsub.s32 2, %v121
  %v123 = vrot.slane %v13, %v122
  %v124 = vmul.f32 %v118, %v123
  %v125 = vadd.f32 %v115, %v124
  %126 = vset.pattern.permute.xlu0 8
  %127 = vperm.xlu0 %126, %v40
  %v128 = vpop.permute.xlu0 %127
  %v130 = vlaneseq
  %v131 = vshrl.u32 %v130, 7
  %v132 = vsub.s32 3, %v131
  %v133 = vrot.slane %v13, %v132
  %v134 = vmul.f32 %v128, %v133
  %v135 = vadd.f32 %v125, %v134
  %136 = vset.pattern.permute.xlu0 9
  %137 = vperm.xlu0 %136, %v40
  %v138 = vpop.permute.xlu0 %137
  %v140 = vlaneseq
  %v141 = vshrl.u32 %v140, 7
  %v142 = vsub.s32 4, %v141
  %v143 = vrot.slane %v13, %v142
  %v144 = vmul.f32 %v138, %v143
  %v145 = vadd.f32 %v135, %v144
  %146 = vset.pattern.permute.xlu0 10
  %147 = vperm.xlu0 %146, %v40
  %v148 = vpop.permute.xlu0 %147
  %v150 = vlaneseq
  %v151 = vshrl.u32 %v150, 7
  %v152 = vsub.s32 5, %v151
  %v153 = vrot.slane %v13, %v152
  %v154 = vmul.f32 %v148, %v153
  %v155 = vadd.f32 %v145, %v154
  %156 = vset.pattern.permute.xlu0 11
  %157 = vperm.xlu0 %156, %v40
  %v158 = vpop.permute.xlu0 %157
  %v160 = vlaneseq
  %v161 = vshrl.u32 %v160, 7
  %v162 = vsub.s32 6, %v161
  %v163 = vrot.slane %v13, %v162
  %v164 = vmul.f32 %v158, %v163
  %v165 = vadd.f32 %v155, %v164
  %166 = vset.pattern.permute.xlu0 12
  %167 = vperm.xlu0 %166, %v40
  %v168 = vpop.permute.xlu0 %167
  %v170 = vlaneseq
  %v171 = vshrl.u32 %v170, 7
  %v172 = vsub.s32 7, %v171
  %v173 = vrot.slane %v13, %v172
  %v174 = vmul.f32 %v168, %v173
  %v175 = vadd.f32 %v165, %v174
  %176 = vset.pattern.permute.xlu0 13
  %177 = vperm.xlu0 %176, %v40
  %v178 = vpop.permute.xlu0 %177
  %v180 = vlaneseq
  %v181 = vshrl.u32 %v180, 7
  %v182 = vsub.s32 0, %v181
  %v183 = vrot.slane %v14, %v182
  %v184 = vmul.f32 %v178, %v183
  %v185 = vadd.f32 %v175, %v184
  %186 = vset.pattern.permute.xlu0 14
  %187 = vperm.xlu0 %186, %v40
  %v188 = vpop.permute.xlu0 %187
  %v190 = vlaneseq
  %v191 = vshrl.u32 %v190, 7
  %v192 = vsub.s32 1, %v191
  %v193 = vrot.slane %v14, %v192
  %v194 = vmul.f32 %v188, %v193
  %v195 = vadd.f32 %v185, %v194
  %196 = vset.pattern.permute.xlu0 15
  %197 = vperm.xlu0 %196, %v40
  %v198 = vpop.permute.xlu0 %197
  %v200 = vlaneseq
  %v201 = vshrl.u32 %v200, 7
  %v202 = vsub.s32 2, %v201
  %v203 = vrot.slane %v14, %v202
  %v204 = vmul.f32 %v198, %v203
  %v205 = vadd.f32 %v195, %v204
  %v206 = vtanh.pop %v205
  %vm207 = vcmask 23552
  %208 = vst.msk [vmem:[%s2] sm:$0xff] %vm207, %v206
  // Predicated region
  $region10: #{tpu_custom_call.1} parent=0 // pred_check
    _
  $region11: #{tpu_custom_call.1} parent=0 // pred_check_branch
    %210 = sbr.rel (0) target = $region13
  $region12: #{tpu_custom_call.1} parent=0 // pred_region
    _
  $region13: #{tpu_custom_call.1} parent=0 // pred_fallthru
    _
  // Predicated region
  $region14: #{tpu_custom_call.1} parent=0 // pred_check
    _
  $region15: #{tpu_custom_call.1} parent=0 // pred_check_branch
    %212 = sbr.rel (0) target = $region17
  $region16: #{tpu_custom_call.1} parent=0 // pred_region
    _
  $region17: #{tpu_custom_call.1} parent=0 // pred_fallthru
    _

</llo_original>
